<compile_context>
chip_gen: v7x
topology: tpu7x:2x2x1
jax: 0.10.0
libtpu: 0.0.40
codegen_flags: <defaults>
</compile_context>

<pallas_src>
import jax
import jax.numpy as jnp
from jax.experimental import pallas as pl
from jax.experimental.pallas import tpu as pltpu


class ToCatch(Exception):
    pass


# ----------------------------------------------------------------------------
# Minimal Pallas kernel: identity copy of a whole-array VMEM tile.
# (No real compute exists in ExceptionLoss.forward -- it raises before touching
# its inputs -- so this is plumbing validation only.)
# ----------------------------------------------------------------------------
def _identity_kernel(x_ref, o_ref):
    o_ref[...] = x_ref[...]


def pallas_identity(x2d: jax.Array) -> jax.Array:
    """Identity copy of a lane-dense [R, C] slab (R % 8 == 0, C % 128 == 0).

    Single pallas_call with no grid and whole-array VMEM blocks: at 8 KiB the
    kernel is 100% dispatch/DMA-latency bound, so any grid loop, index_map, or
    double-buffering is dead overhead.  See module docstring for how to tile
    this pattern if scaled to real sizes (parallel row sharding for v7x's two
    TCs, >=512-row blocks, per-generation VMEM caps).
    """
    R, C = x2d.shape
    return pl.pallas_call(
        _identity_kernel,
        out_shape=jax.ShapeDtypeStruct((R, C), x2d.dtype),
        in_specs=[pl.BlockSpec(memory_space=pltpu.MemorySpace.VMEM)],
        out_specs=pl.BlockSpec(memory_space=pltpu.MemorySpace.VMEM),
    )(x2d)


# ----------------------------------------------------------------------------
# ExceptionLoss: faithful reproduction of the PyTorch module's forward.
# ----------------------------------------------------------------------------
class ExceptionLoss:
    def __init__(self):
        # PyTorch __init__ registers no parameters; nothing to initialize.
        pass

    def forward(self, *inputs, **kwargs):
        # TODO(synk): raising a host-side Python exception has no Pallas/TPU
        # kernel equivalent; the exception is raised here, exactly mirroring
        # the PyTorch module (it never inspects its inputs and launches no
        # kernels -- zero kernel launches is the correct "hot path").
        raise ToCatch

    __call__ = forward


if __name__ == "__main__":
    key = jax.random.PRNGKey(0)

    # Small example input consistent with a generic loss-module call signature.
    B, Ch, H, W = 2, 4, 16, 16
    x = jax.random.normal(key, (B, Ch, H, W), dtype=jnp.float32)

    # Exercise the Pallas kernel once (test harness only; forward() never calls
    # it): reshape NCHW to a lane-dense 2D slab [B*Ch, H*W] = [8, 256] so the
    # last dim is a multiple of 128 (unmasked stores, no padding bytes moved),
    # run the identity copy, block on the result.
    x2d = x.reshape(B * Ch, H * W)                       # [8, 256], lane-dense
    y2d = pallas_identity(x2d)
    jax.block_until_ready(y2d)
    y = y2d.reshape(B, Ch, H, W)
    assert jnp.allclose(y, x), "pass-through kernel mismatch"

    # Reproduce the module's forward semantics: it must raise ToCatch.
    loss = ExceptionLoss()
    try:
        loss(x)
        raised = False
    except ToCatch:
        raised = True
    assert raised, "ExceptionLoss.forward did not raise ToCatch"

    print("KERNEL_OK")
</pallas_src>

<mosaic_0001>
module attributes {stable_mosaic.version = 11 : i64} {
  func.func @_identity_kernel(%arg0: memref<8x256xf32, #tpu.memory_space<vmem>>, %arg1: memref<8x256xf32, #tpu.memory_space<vmem>>) attributes {dimension_semantics = [], scalar_prefetch = 0 : i64, scratch_operands = 0 : i64, tpu.core_type = #tpu.core_type<tc>} {
    %c0 = arith.constant 0 : index
    %c0_0 = arith.constant 0 : index
    %0 = vector.load %arg0[%c0, %c0_0] : memref<8x256xf32, #tpu.memory_space<vmem>>, vector<8x256xf32>
    %c0_1 = arith.constant 0 : index
    %c0_2 = arith.constant 0 : index
    %1 = vector.load %arg1[%c0_1, %c0_2] : memref<8x256xf32, #tpu.memory_space<vmem>>, vector<8x256xf32>
    tpu.vector_store %arg1[%c0_1, %c0_2], %0 {strides = array<i32>} : memref<8x256xf32, #tpu.memory_space<vmem>>, vector<8x256xf32>,
    return
  }
}

</mosaic_0001>

<llo_original>
// kernel: tpu_custom_call.1
$region0: #{tpu_custom_call.1}
  #allocation0 [shape = 'u32[]', space=smem, size = 0x4, offset = 0x4, fixed_abs, tag = 'smem constant byte address 0x4 - core index']
  #allocation1 [shape = 'u32[144,128]{1,0:T(1,128)}', space=vmem, size = 0x12000, scoped, tag = 'internal scratch']
  %s0 = inlined_call_operand.hbm [shape: f32[8,256], index: 0, kind: input, shape index: {}]
  %s1 = inlined_call_operand.hbm [shape: f32[8,256], index: 1, kind: output, shape index: {}]
  %s2 = sld [smem:[#allocation0]]
  $region18: #{tpu_custom_call.1} parent=0
    _
  %s4 = ssub.s32 1, %s2
  %s5 = scalar_select 0, %s4, %s2
  $region1: #{tpu_custom_call.1} parent=0
    #allocation2 [shape = 'u8[8192]{0}', space=vmem, size = 0x2000, scoped, tag = 'input window, operand 0, single buffered']
    #allocation3 [shape = 's32[1]{0}', space=sflag, size = 0x4, scoped, tag = 'scoped memory for tpu_custom_call.1']
    #allocation4 [shape = 's32[1]{0}', space=sflag, size = 0x4, scoped, tag = 'scoped memory for tpu_custom_call.1']
    #allocation5 [shape = 'u8[8192]{0}', space=vmem, size = 0x2000, scoped, tag = 'output window, operand 0, single buffered']
    %6 = vsyncpa [#allocation3], 0
    %7 = vsyncpa [#allocation4], 0
    // Predicated region
    $region2: #{tpu_custom_call.1} parent=1 // pred_check
      _
    $region3: #{tpu_custom_call.1} parent=1 // pred_check_branch
      %9 = sbr.rel (0) target = $region5
    $region4: #{tpu_custom_call.1} parent=1 // pred_region
      %s11 = ssub.s32 256, 256
      %12 = vsyncadd [#allocation3], %s11
      %s14 = sshll.u32 [#allocation2], 4
      %s15 = int_to_ptr.vmem [resolvable:$true] %s14
      %17 = dma.hbm_to_vmem [thread:$0]  %s0, 256, %s15, [#allocation3]
    $region5: #{tpu_custom_call.1} parent=1 // pred_fallthru
      _
    // Predicated region
    $region6: #{tpu_custom_call.1} parent=1 // pred_check
      _
    $region7: #{tpu_custom_call.1} parent=1 // pred_check_branch
      %19 = sbr.rel (0) target = $region9
    $region8: #{tpu_custom_call.1} parent=1 // pred_region
      %20 = dma.done [#allocation3], 256
    $region9: #{tpu_custom_call.1} parent=1 // pred_fallthru
      _
    %v21 = vld [vmem:[#allocation2] sm:$0xff]
    %v22 = vld [vmem:[#allocation2 + $0x8] sm:$0xff]
    %23 = vst [vmem:[#allocation5] sm:$0xff] %v21
    %24 = vst [vmem:[#allocation5 + $0x8] sm:$0xff] %v22
    // Predicated region
    $region10: #{tpu_custom_call.1} parent=1 // pred_check
      _
    $region11: #{tpu_custom_call.1} parent=1 // pred_check_branch
      %26 = sbr.rel (0) target = $region13
    $region12: #{tpu_custom_call.1} parent=1 // pred_region
      %s28 = ssub.s32 256, 256
      %29 = vsyncadd [#allocation4], %s28
      %s31 = sshll.u32 [#allocation5], 4
      %s32 = int_to_ptr.vmem [resolvable:$true] %s31
      %34 = dma.vmem_to_hbm [thread:$0]  %s32, 256, %s1, [#allocation4]
    $region13: #{tpu_custom_call.1} parent=1 // pred_fallthru
      _
    // Predicated region
    $region14: #{tpu_custom_call.1} parent=1 // pred_check
      _
    $region15: #{tpu_custom_call.1} parent=1 // pred_check_branch
      %36 = sbr.rel (0) target = $region17
    $region16: #{tpu_custom_call.1} parent=1 // pred_region
      %37 = dma.done [#allocation4], 256
    $region17: #{tpu_custom_call.1} parent=1 // pred_fallthru
      _
    %38 = vsyncpa [#allocation3], 1
    %39 = vsyncpa [#allocation4], 1

</llo_original>
